<compile_context>
chip_gen: v5e
topology: v5e:2x2
jax: 0.10.0
libtpu: 0.0.40
codegen_flags: <defaults>
</compile_context>

<pallas_src>
import functools
import math

import jax
import jax.numpy as jnp
from jax.experimental import pallas as pl
from jax.experimental.pallas import tpu as pltpu


def _mlp_kernel(x_ref, w1_ref, b1_ref, w2_ref, b2_ref, w3_ref, b3_ref, o_ref):
    # x arrives as f32 straight from HBM; quantize to bf16 on the VPU right
    # before the MXU matmul (f32 accumulate via preferred_element_type).
    x_bf16 = x_ref[...].astype(jnp.bfloat16)
    h1 = jnp.dot(x_bf16, w1_ref[...], preferred_element_type=jnp.float32)
    h1 = jnp.maximum(h1 + b1_ref[...], 0.0)

    h2 = jnp.dot(h1.astype(jnp.bfloat16), w2_ref[...],
                 preferred_element_type=jnp.float32)
    h2 = jnp.maximum(h2 + b2_ref[...], 0.0)

    # Output head (out_features == 1): contract w3 (1, h2) with h2 (tb, h2)
    # along the feature axis -> lane-dense (1, tb) result (batch on the lane
    # axis), without materializing h2.T through the XLU.
    out_t = jax.lax.dot_general(
        w3_ref[...], h2,
        dimension_numbers=(((1,), (1,)), ((), ())),
        preferred_element_type=jnp.float32)
    o_ref[...] = (out_t + b3_ref[0]).astype(o_ref.dtype)


def _round_up(a, m):
    return (a + m - 1) // m * m


def _pick_tile_cap(in_dim):
    """Per-generation cap on the batch tile (rows), bounded by a VMEM budget
    for the double-buffered f32 x tile."""
    cap = 2048                       # v6e / v7x: fast HBM -> big tiles
    try:
        kind = jax.devices()[0].device_kind.lower()
        if ("v5e" in kind) or ("v5 lite" in kind) or ("v5lite" in kind):
            cap = 1024               # v5e: slower HBM, smaller scoped VMEM
    except Exception:
        pass
    # Keep the double-buffered f32 x tile under ~20 MiB regardless of in_dim.
    budget_rows = (20 * 1024 * 1024) // (2 * 4 * max(in_dim, 1))
    cap = min(cap, max(128, (budget_rows // 128) * 128))
    return cap


def _choose_tile(batch, cap):
    """Pick (tile_b, num_tiles). tile_b is a multiple of 8 (single small tile)
    or a multiple of 128 (tiled path -> dense lane stores)."""
    b8 = _round_up(batch, 8)
    if b8 < 256 and b8 <= cap:
        return b8, 1                            # one small tile
    n = max(2, pl.cdiv(b8, cap))                # >=2 steps -> both v7x cores
    tb = min(cap, _round_up(pl.cdiv(b8, n), 128))
    return tb, pl.cdiv(batch, tb)


@functools.partial(jax.jit, static_argnames=("tile_b",))
def dnn_forward(x, params, tile_b=None):
    """x: [batch, *feature_dims] f32; params: W1,b1,W2,b2,W3,b3 with W as (in, out)."""
    batch = x.shape[0]
    x2 = x.reshape(batch, -1)
    in_dim = x2.shape[1]
    h1_dim = params["W1"].shape[1]
    h2_dim = params["W2"].shape[1]

    cap = int(tile_b) if tile_b is not None else _pick_tile_cap(in_dim)
    tb, n_tiles = _choose_tile(batch, cap)
    padded_out = n_tiles * tb

    # Only the single small tile needs x padded to a multiple of 8 rows; the
    # tiled path lets Pallas handle the ragged last block (no extra HBM copy).
    if n_tiles == 1 and tb != batch:
        x2 = jnp.pad(x2, ((0, tb - batch), (0, 0)))

    # Weights are tiny -> bf16 for the MXU; x stays f32 at the call boundary.
    w1 = params["W1"].astype(jnp.bfloat16)
    w2 = params["W2"].astype(jnp.bfloat16)
    w3_row = params["W3"].reshape(1, h2_dim)   # (1, h2) f32 head weights
    b3 = params["b3"].reshape(1)               # scalar -> SMEM

    resident = lambda i: (0, 0)                # weights/biases: same block every step

    flops = 2 * padded_out * (in_dim * h1_dim + h1_dim * h2_dim + h2_dim)
    bytes_accessed = (
        x2.shape[0] * in_dim * 4                   # x (f32)
        + (in_dim * h1_dim + h1_dim * h2_dim) * 2  # W1, W2 (bf16)
        + (h1_dim + 2 * h2_dim + 1) * 4            # b1, b2, W3, b3 (f32)
        + padded_out * 4)                          # output (f32)

    out_t = pl.pallas_call(
        _mlp_kernel,
        out_shape=jax.ShapeDtypeStruct((1, padded_out), jnp.float32),
        grid=(n_tiles,),
        in_specs=[
            pl.BlockSpec((tb, in_dim), lambda i: (i, 0)),       # x tile (f32)
            pl.BlockSpec((in_dim, h1_dim), resident),           # W1 (resident)
            pl.BlockSpec((1, h1_dim), resident),                # b1
            pl.BlockSpec((h1_dim, h2_dim), resident),           # W2
            pl.BlockSpec((1, h2_dim), resident),                # b2
            pl.BlockSpec((1, h2_dim), resident),                # W3 row
            pl.BlockSpec(memory_space=pltpu.MemorySpace.SMEM),  # b3 scalar
        ],
        out_specs=pl.BlockSpec((1, tb), lambda i: (0, i)),
        compiler_params=pltpu.CompilerParams(
            dimension_semantics=("parallel",),
            vmem_limit_bytes=32 * 1024 * 1024),
        cost_estimate=pl.CostEstimate(
            flops=flops, transcendentals=0, bytes_accessed=bytes_accessed),
    )(x2, w1, params["b1"], w2, params["b2"], w3_row, b3)

    # (1, padded_out) lane-major -> (batch, 1); trailing lanes (padding /
    # stale-VMEM garbage rows) are dropped here.
    return out_t[0, :batch].reshape(batch, 1)


def init_params(key, in_dim, hidden_layers=(64, 32)):
    """Deterministic synthetic init. Weights stored as (in, out):
    y = x @ W + b == PyTorch's x @ W_pt.T + b."""
    dims = [in_dim] + list(hidden_layers) + [1]
    params = {}
    for i in range(len(dims) - 1):
        key, kw, kb = jax.random.split(key, 3)
        bound = 1.0 / math.sqrt(dims[i])
        params[f"W{i + 1}"] = jax.random.uniform(
            kw, (dims[i], dims[i + 1]), jnp.float32, -bound, bound)
        params[f"b{i + 1}"] = jax.random.uniform(
            kb, (1, dims[i + 1]), jnp.float32, -bound, bound)
    return params


def reference_forward(x, params):
    """Pure-JAX reference using the same bf16-matmul / f32-accumulate numerics."""
    h = x.reshape(x.shape[0], -1).astype(jnp.bfloat16)
    h = jnp.dot(h, params["W1"].astype(jnp.bfloat16),
                preferred_element_type=jnp.float32)
    h = jnp.maximum(h + params["b1"], 0.0)
    h = jnp.dot(h.astype(jnp.bfloat16), params["W2"].astype(jnp.bfloat16),
                preferred_element_type=jnp.float32)
    h = jnp.maximum(h + params["b2"], 0.0)
    return jnp.dot(h, params["W3"], preferred_element_type=jnp.float32) + params["b3"]


if __name__ == "__main__":
    key = jax.random.PRNGKey(0)
    key, kx = jax.random.split(key)

    # input_dim = (4, 16, 16) -> 1024 flattened features, batch = 2.
    batch, input_dim = 2, (4, 16, 16)
    x = jax.random.normal(kx, (batch,) + input_dim, jnp.float32)
    params = init_params(key, math.prod(input_dim), hidden_layers=(64, 32))

    out = jax.block_until_ready(dnn_forward(x, params))
    ref = reference_forward(x, params)

    assert out.shape == (batch, 1), out.shape
    assert jnp.allclose(out, ref, atol=2e-3, rtol=2e-3), (out, ref)
    print("KERNEL_OK")
</pallas_src>

<mosaic_0001>
module attributes {stable_mosaic.version = 11 : i64} {
  func.func @_mlp_kernel(%arg0: i32, %arg1: memref<8x1024xf32, #tpu.memory_space<vmem>>, %arg2: memref<1024x64xbf16, #tpu.memory_space<vmem>>, %arg3: memref<1x64xf32, #tpu.memory_space<vmem>>, %arg4: memref<64x32xbf16, #tpu.memory_space<vmem>>, %arg5: memref<1x32xf32, #tpu.memory_space<vmem>>, %arg6: memref<1x32xf32, #tpu.memory_space<vmem>>, %arg7: memref<1xf32, #tpu.memory_space<smem>>, %arg8: memref<1x8xf32, #tpu.memory_space<vmem>>) attributes {dimension_semantics = [#tpu.dimension_semantics<parallel>], iteration_bounds = array<i64: 1>, scalar_prefetch = 0 : i64, scratch_operands = 0 : i64, tpu.core_type = #tpu.core_type<tc>, window_params = [{transform_indices = @transform_0, window_bounds = array<i64: 8, 1024>}, {pipeline_mode = #tpu.pipeline_mode<synchronous>, transform_indices = @transform_1, window_bounds = array<i64: 1024, 64>}, {pipeline_mode = #tpu.pipeline_mode<synchronous>, transform_indices = @transform_2, window_bounds = array<i64: 1, 64>}, {pipeline_mode = #tpu.pipeline_mode<synchronous>, transform_indices = @transform_3, window_bounds = array<i64: 64, 32>}, {pipeline_mode = #tpu.pipeline_mode<synchronous>, transform_indices = @transform_4, window_bounds = array<i64: 1, 32>}, {pipeline_mode = #tpu.pipeline_mode<synchronous>, transform_indices = @transform_5, window_bounds = array<i64: 1, 32>}, {transform_indices = @transform_6, window_bounds = array<i64: 1>}, {transform_indices = @transform_7, window_bounds = array<i64: 1, 8>}]} {
    %c0 = arith.constant 0 : index
    %c0_0 = arith.constant 0 : index
    %0 = vector.load %arg1[%c0, %c0_0] : memref<8x1024xf32, #tpu.memory_space<vmem>>, vector<8x1024xf32>
    %1 = arith.truncf %0 : vector<8x1024xf32> to vector<8x1024xbf16>
    %c0_1 = arith.constant 0 : index
    %c0_2 = arith.constant 0 : index
    %2 = vector.load %arg2[%c0_1, %c0_2] : memref<1024x64xbf16, #tpu.memory_space<vmem>>, vector<1024x64xbf16>
    %cst = arith.constant dense<0.000000e+00> : vector<8x64xf32>
    %3 = tpu.matmul %1, %2, %cst {dimension_numbers = #tpu.dot_dimension_numbers<[1], [0], [0], [1], [0, 0, 1, 1], [], []>} : vector<8x1024xbf16>, vector<1024x64xbf16>, vector<8x64xf32> -> vector<8x64xf32>
    %c0_3 = arith.constant 0 : index
    %c0_4 = arith.constant 0 : index
    %4 = vector.load %arg3[%c0_3, %c0_4] : memref<1x64xf32, #tpu.memory_space<vmem>>, vector<1x64xf32>
    %5 = vector.broadcast %4 : vector<1x64xf32> to vector<8x64xf32>
    %6 = arith.addf %3, %5 : vector<8x64xf32>
    %cst_5 = arith.constant 0.000000e+00 : f32
    %7 = vector.broadcast %cst_5 : f32 to vector<8x64xf32>
    %8 = arith.maximumf %6, %7 : vector<8x64xf32>
    %9 = arith.truncf %8 : vector<8x64xf32> to vector<8x64xbf16>
    %c0_6 = arith.constant 0 : index
    %c0_7 = arith.constant 0 : index
    %10 = vector.load %arg4[%c0_6, %c0_7] : memref<64x32xbf16, #tpu.memory_space<vmem>>, vector<64x32xbf16>
    %cst_8 = arith.constant dense<0.000000e+00> : vector<8x32xf32>
    %11 = tpu.matmul %9, %10, %cst_8 {dimension_numbers = #tpu.dot_dimension_numbers<[1], [0], [0], [1], [0, 0, 1, 1], [], []>} : vector<8x64xbf16>, vector<64x32xbf16>, vector<8x32xf32> -> vector<8x32xf32>
    %c0_9 = arith.constant 0 : index
    %c0_10 = arith.constant 0 : index
    %12 = vector.load %arg5[%c0_9, %c0_10] : memref<1x32xf32, #tpu.memory_space<vmem>>, vector<1x32xf32>
    %13 = vector.broadcast %12 : vector<1x32xf32> to vector<8x32xf32>
    %14 = arith.addf %11, %13 : vector<8x32xf32>
    %cst_11 = arith.constant 0.000000e+00 : f32
    %15 = vector.broadcast %cst_11 : f32 to vector<8x32xf32>
    %16 = arith.maximumf %14, %15 : vector<8x32xf32>
    %c0_12 = arith.constant 0 : index
    %c0_13 = arith.constant 0 : index
    %17 = vector.load %arg6[%c0_12, %c0_13] : memref<1x32xf32, #tpu.memory_space<vmem>>, vector<1x32xf32>
    %cst_14 = arith.constant dense<0.000000e+00> : vector<1x8xf32>
    %18 = tpu.matmul %17, %16, %cst_14 {dimension_numbers = #tpu.dot_dimension_numbers<[1], [1], [0], [0], [0, 0, 1, 0], [], []>} : vector<1x32xf32>, vector<8x32xf32>, vector<1x8xf32> -> vector<1x8xf32>
    %c0_15 = arith.constant 0 : index
    %19 = memref.load %arg7[%c0_15] : memref<1xf32, #tpu.memory_space<smem>>
    %20 = vector.broadcast %19 : f32 to vector<1x8xf32>
    %21 = arith.addf %18, %20 : vector<1x8xf32>
    %c0_16 = arith.constant 0 : index
    %c0_17 = arith.constant 0 : index
    %22 = vector.load %arg8[%c0_16, %c0_17] : memref<1x8xf32, #tpu.memory_space<vmem>>, vector<1x8xf32>
    tpu.vector_store %arg8[%c0_16, %c0_17], %21 {strides = array<i32>} : memref<1x8xf32, #tpu.memory_space<vmem>>, vector<1x8xf32>,
    return
  }
  func.func @transform_0(%arg0: i32) -> (i32, i32) {
    %c0_i32 = arith.constant 0 : i32
    %c0_i32_0 = arith.constant 0 : i32
    return %arg0, %c0_i32 : i32, i32
  }
  func.func @transform_1(%arg0: i32) -> (i32, i32) {
    %c0_i32 = arith.constant 0 : i32
    %c0_i32_0 = arith.constant 0 : i32
    %c0_i32_1 = arith.constant 0 : i32
    return %c0_i32, %c0_i32_0 : i32, i32
  }
  func.func @transform_2(%arg0: i32) -> (i32, i32) {
    %c0_i32 = arith.constant 0 : i32
    %c0_i32_0 = arith.constant 0 : i32
    %c0_i32_1 = arith.constant 0 : i32
    return %c0_i32, %c0_i32_0 : i32, i32
  }
  func.func @transform_3(%arg0: i32) -> (i32, i32) {
    %c0_i32 = arith.constant 0 : i32
    %c0_i32_0 = arith.constant 0 : i32
    %c0_i32_1 = arith.constant 0 : i32
    return %c0_i32, %c0_i32_0 : i32, i32
  }
  func.func @transform_4(%arg0: i32) -> (i32, i32) {
    %c0_i32 = arith.constant 0 : i32
    %c0_i32_0 = arith.constant 0 : i32
    %c0_i32_1 = arith.constant 0 : i32
    return %c0_i32, %c0_i32_0 : i32, i32
  }
  func.func @transform_5(%arg0: i32) -> (i32, i32) {
    %c0_i32 = arith.constant 0 : i32
    %c0_i32_0 = arith.constant 0 : i32
    %c0_i32_1 = arith.constant 0 : i32
    return %c0_i32, %c0_i32_0 : i32, i32
  }
  func.func @transform_6(%arg0: i32) -> i32 {
    %c0_i32 = arith.constant 0 : i32
    %c0_i32_0 = arith.constant 0 : i32
    return %c0_i32 : i32
  }
  func.func @transform_7(%arg0: i32) -> (i32, i32) {
    %c0_i32 = arith.constant 0 : i32
    %c0_i32_0 = arith.constant 0 : i32
    return %c0_i32, %arg0 : i32, i32
  }
}

</mosaic_0001>

<llo_original>
// kernel: dnn_forward.1
$region0: #{dnn_forward.1}
  #allocation0 [shape = 'u32[]', space=smem, size = 0x4, offset = 0x4, fixed_abs, tag = 'smem constant byte address 0x4 - core index']
  #allocation1 [shape = 'u32[72,128]{1,0:T(1,128)}', space=vmem, size = 0x9000, scoped, tag = 'internal scratch']
  #allocation2 [shape = 'f32[1]{0:T(128)S(6)}', space=smem, size = 0x200, scoped, tag = 'scoped memory for dnn_forward.1']
  %s0 = inlined_call_operand.vmem [shape: f32[8,1024], index: 0, kind: input, shape index: {}]
  %s1 = inlined_call_operand.vmem [shape: bf16[1024,64], index: 1, kind: input, shape index: {}]
  %s2 = inlined_call_operand.vmem [shape: f32[1,64], index: 2, kind: input, shape index: {}]
  %s3 = inlined_call_operand.vmem [shape: bf16[64,32], index: 3, kind: input, shape index: {}]
  %s4 = inlined_call_operand.vmem [shape: f32[1,32], index: 4, kind: input, shape index: {}]
  %s5 = inlined_call_operand.vmem [shape: f32[1,32], index: 5, kind: input, shape index: {}]
  %s6 = inlined_call_operand.<no memory space> [shape: f32[1], index: 6, kind: input, shape index: {}]
  %s7 = inlined_call_operand.vmem [shape: f32[1,8], index: 7, kind: output, shape index: {}]
  %s8 = sld [smem:[#allocation0]]
  $region38: #{dnn_forward.1} parent=0
    _
  %s10 = ssub.s32 1, %s8
  %s11 = scalar_select 0, %s10, %s8
  %12 = sst [smem:[#allocation2]] %s6
  // Predicated region
  $region2: #{dnn_forward.1} parent=0 // pred_check
    _
  $region3: #{dnn_forward.1} parent=0 // pred_check_branch
    %14 = sbr.rel (0) target = $region5
  $region4: #{dnn_forward.1} parent=0 // pred_region
    _
  $region5: #{dnn_forward.1} parent=0 // pred_fallthru
    _
  // Predicated region
  $region6: #{dnn_forward.1} parent=0 // pred_check
    _
  $region7: #{dnn_forward.1} parent=0 // pred_check_branch
    %16 = sbr.rel (0) target = $region9
  $region8: #{dnn_forward.1} parent=0 // pred_region
    _
  $region9: #{dnn_forward.1} parent=0 // pred_fallthru
    _
  // Predicated region
  $region10: #{dnn_forward.1} parent=0 // pred_check
    _
  $region11: #{dnn_forward.1} parent=0 // pred_check_branch
    %18 = sbr.rel (0) target = $region13
  $region12: #{dnn_forward.1} parent=0 // pred_region
    _
  $region13: #{dnn_forward.1} parent=0 // pred_fallthru
    _
  // Predicated region
  $region14: #{dnn_forward.1} parent=0 // pred_check
    _
  $region15: #{dnn_forward.1} parent=0 // pred_check_branch
    %20 = sbr.rel (0) target = $region17
  $region16: #{dnn_forward.1} parent=0 // pred_region
    _
  $region17: #{dnn_forward.1} parent=0 // pred_fallthru
    _
  // Predicated region
  $region18: #{dnn_forward.1} parent=0 // pred_check
    _
  $region19: #{dnn_forward.1} parent=0 // pred_check_branch
    %22 = sbr.rel (0) target = $region21
  $region20: #{dnn_forward.1} parent=0 // pred_region
    _
  $region21: #{dnn_forward.1} parent=0 // pred_fallthru
    _
  // Predicated region
  $region22: #{dnn_forward.1} parent=0 // pred_check
    _
  $region23: #{dnn_forward.1} parent=0 // pred_check_branch
    %24 = sbr.rel (0) target = $region25
  $region24: #{dnn_forward.1} parent=0 // pred_region
    _
  $region25: #{dnn_forward.1} parent=0 // pred_fallthru
    _
  // Predicated region
  $region26: #{dnn_forward.1} parent=0 // pred_check
    _
  $region27: #{dnn_forward.1} parent=0 // pred_check_branch
    %26 = sbr.rel (0) target = $region29
  $region28: #{dnn_forward.1} parent=0 // pred_region
    _
  $region29: #{dnn_forward.1} parent=0 // pred_fallthru
    _
  %v28 = vld [vmem:[%s0] sm:$0xff]
  %v29 = vld [vmem:[%s0 + $0x8] sm:$0xff]
  %v30 = vld [vmem:[%s0 + $0x10] sm:$0xff]
  %v31 = vld [vmem:[%s0 + $0x18] sm:$0xff]
  %v32 = vld [vmem:[%s0 + $0x20] sm:$0xff]
  %v33 = vld [vmem:[%s0 + $0x28] sm:$0xff]
  %v34 = vld [vmem:[%s0 + $0x30] sm:$0xff]
  %v35 = vld [vmem:[%s0 + $0x38] sm:$0xff]
  %v36 = vpack.c.bf16 %v28, %v28
  %v37 = vpack.c.bf16 %v29, %v29
  %v38 = vpack.c.bf16 %v30, %v30
  %v39 = vpack.c.bf16 %v31, %v31
  %v40 = vpack.c.bf16 %v32, %v32
  %v41 = vpack.c.bf16 %v33, %v33
  %v42 = vpack.c.bf16 %v34, %v34
  %v43 = vpack.c.bf16 %v35, %v35
  %v44 = vld [vmem:[%s1] sm:$0xf]
  %v45 = vld [vmem:[%s1 + $0x4] sm:$0xf]
  %v46 = vld [vmem:[%s1 + $0x8] sm:$0xf]
  %v47 = vld [vmem:[%s1 + $0xc] sm:$0xf]
  %v48 = vld [vmem:[%s1 + $0x10] sm:$0xf]
  %v49 = vld [vmem:[%s1 + $0x14] sm:$0xf]
  %v50 = vld [vmem:[%s1 + $0x18] sm:$0xf]
  %v51 = vld [vmem:[%s1 + $0x1c] sm:$0xf]
  %v52 = vld [vmem:[%s1 + $0x20] sm:$0xf]
  %v53 = vld [vmem:[%s1 + $0x24] sm:$0xf]
  %v54 = vld [vmem:[%s1 + $0x28] sm:$0xf]
  %v55 = vld [vmem:[%s1 + $0x2c] sm:$0xf]
  %v56 = vld [vmem:[%s1 + $0x30] sm:$0xf]
  %v57 = vld [vmem:[%s1 + $0x34] sm:$0xf]
  %v58 = vld [vmem:[%s1 + $0x38] sm:$0xf]
  %v59 = vld [vmem:[%s1 + $0x3c] sm:$0xf]
  %v60 = vld [vmem:[%s1 + $0x40] sm:$0xf]
  %v61 = vld [vmem:[%s1 + $0x44] sm:$0xf]
  %v62 = vld [vmem:[%s1 + $0x48] sm:$0xf]
  %v63 = vld [vmem:[%s1 + $0x4c] sm:$0xf]
  %v64 = vld [vmem:[%s1 + $0x50] sm:$0xf]
  %v65 = vld [vmem:[%s1 + $0x54] sm:$0xf]
  %v66 = vld [vmem:[%s1 + $0x58] sm:$0xf]
  %v67 = vld [vmem:[%s1 + $0x5c] sm:$0xf]
  %v68 = vld [vmem:[%s1 + $0x60] sm:$0xf]
  %v69 = vld [vmem:[%s1 + $0x64] sm:$0xf]
  %v70 = vld [vmem:[%s1 + $0x68] sm:$0xf]
  %v71 = vld [vmem:[%s1 + $0x6c] sm:$0xf]
  %v72 = vld [vmem:[%s1 + $0x70] sm:$0xf]
  %v73 = vld [vmem:[%s1 + $0x74] sm:$0xf]
  %v74 = vld [vmem:[%s1 + $0x78] sm:$0xf]
  %v75 = vld [vmem:[%s1 + $0x7c] sm:$0xf]
  %v76 = vld [vmem:[%s1 + $0x80] sm:$0xf]
  %v77 = vld [vmem:[%s1 + $0x84] sm:$0xf]
  %v78 = vld [vmem:[%s1 + $0x88] sm:$0xf]
  %v79 = vld [vmem:[%s1 + $0x8c] sm:$0xf]
  %v80 = vld [vmem:[%s1 + $0x90] sm:$0xf]
  %v81 = vld [vmem:[%s1 + $0x94] sm:$0xf]
  %v82 = vld [vmem:[%s1 + $0x98] sm:$0xf]
  %v83 = vld [vmem:[%s1 + $0x9c] sm:$0xf]
  %v84 = vld [vmem:[%s1 + $0xa0] sm:$0xf]
  %v85 = vld [vmem:[%s1 + $0xa4] sm:$0xf]
  %v86 = vld [vmem:[%s1 + $0xa8] sm:$0xf]
  %v87 = vld [vmem:[%s1 + $0xac] sm:$0xf]
  %v88 = vld [vmem:[%s1 + $0xb0] sm:$0xf]
  %v89 = vld [vmem:[%s1 + $0xb4] sm:$0xf]
  %v90 = vld [vmem:[%s1 + $0xb8] sm:$0xf]
  %v91 = vld [vmem:[%s1 + $0xbc] sm:$0xf]
  %v92 = vld [vmem:[%s1 + $0xc0] sm:$0xf]
  %v93 = vld [vmem:[%s1 + $0xc4] sm:$0xf]
  %v94 = vld [vmem:[%s1 + $0xc8] sm:$0xf]
  %v95 = vld [vmem:[%s1 + $0xcc] sm:$0xf]
  %v96 = vld [vmem:[%s1 + $0xd0] sm:$0xf]
  %v97 = vld [vmem:[%s1 + $0xd4] sm:$0xf]
  %v98 = vld [vmem:[%s1 + $0xd8] sm:$0xf]
  %v99 = vld [vmem:[%s1 + $0xdc] sm:$0xf]
  %v100 = vld [vmem:[%s1 + $0xe0] sm:$0xf]
  %v101 = vld [vmem:[%s1 + $0xe4] sm:$0xf]
  %v102 = vld [vmem:[%s1 + $0xe8] sm:$0xf]
  %v103 = vld [vmem:[%s1 + $0xec] sm:$0xf]
  %v104 = vld [vmem:[%s1 + $0xf0] sm:$0xf]
  %v105 = vld [vmem:[%s1 + $0xf4] sm:$0xf]
  %v106 = vld [vmem:[%s1 + $0xf8] sm:$0xf]
  %v107 = vld [vmem:[%s1 + $0xfc] sm:$0xf]
  %v108 = vld [vmem:[%s1 + $0x100] sm:$0xf]
  %v109 = vld [vmem:[%s1 + $0x104] sm:$0xf]
  %v110 = vld [vmem:[%s1 + $0x108] sm:$0xf]
  %v111 = vld [vmem:[%s1 + $0x10c] sm:$0xf]
  %v112 = vld [vmem:[%s1 + $0x110] sm:$0xf]
  %v113 = vld [vmem:[%s1 + $0x114] sm:$0xf]
  %v114 = vld [vmem:[%s1 + $0x118] sm:$0xf]
  %v115 = vld [vmem:[%s1 + $0x11c] sm:$0xf]
  %v116 = vld [vmem:[%s1 + $0x120] sm:$0xf]
  %v117 = vld [vmem:[%s1 + $0x124] sm:$0xf]
  %v118 = vld [vmem:[%s1 + $0x128] sm:$0xf]
  %v119 = vld [vmem:[%s1 + $0x12c] sm:$0xf]
  %v120 = vld [vmem:[%s1 + $0x130] sm:$0xf]
  %v121 = vld [vmem:[%s1 + $0x134] sm:$0xf]
  %v122 = vld [vmem:[%s1 + $0x138] sm:$0xf]
  %v123 = vld [vmem:[%s1 + $0x13c] sm:$0xf]
  %v124 = vld [vmem:[%s1 + $0x140] sm:$0xf]
  %v125 = vld [vmem:[%s1 + $0x144] sm:$0xf]
  %v126 = vld [vmem:[%s1 + $0x148] sm:$0xf]
  %v127 = vld [vmem:[%s1 + $0x14c] sm:$0xf]
  %v128 = vld [vmem:[%s1 + $0x150] sm:$0xf]
  %v129 = vld [vmem:[%s1 + $0x154] sm:$0xf]
  %v130 = vld [vmem:[%s1 + $0x158] sm:$0xf]
  %v131 = vld [vmem:[%s1 + $0x15c] sm:$0xf]
  %v132 = vld [vmem:[%s1 + $0x160] sm:$0xf]
  %v133 = vld [vmem:[%s1 + $0x164] sm:$0xf]
  %v134 = vld [vmem:[%s1 + $0x168] sm:$0xf]
  %v135 = vld [vmem:[%s1 + $0x16c] sm:$0xf]
  %v136 = vld [vmem:[%s1 + $0x170] sm:$0xf]
  %v137 = vld [vmem:[%s1 + $0x174] sm:$0xf]
  %v138 = vld [vmem:[%s1 + $0x178] sm:$0xf]
  %v139 = vld [vmem:[%s1 + $0x17c] sm:$0xf]
  %v140 = vld [vmem:[%s1 + $0x180] sm:$0xf]
  %v141 = vld [vmem:[%s1 + $0x184] sm:$0xf]
  %v142 = vld [vmem:[%s1 + $0x188] sm:$0xf]
  %v143 = vld [vmem:[%s1 + $0x18c] sm:$0xf]
  %v144 = vld [vmem:[%s1 + $0x190] sm:$0xf]
  %v145 = vld [vmem:[%s1 + $0x194] sm:$0xf]
  %v146 = vld [vmem:[%s1 + $0x198] sm:$0xf]
  %v147 = vld [vmem:[%s1 + $0x19c] sm:$0xf]
  %v148 = vld [vmem:[%s1 + $0x1a0] sm:$0xf]
  %v149 = vld [vmem:[%s1 + $0x1a4] sm:$0xf]
  %v150 = vld [vmem:[%s1 + $0x1a8] sm:$0xf]
  %v151 = vld [vmem:[%s1 + $0x1ac] sm:$0xf]
  %v152 = vld [vmem:[%s1 + $0x1b0] sm:$0xf]
  %v153 = vld [vmem:[%s1 + $0x1b4] sm:$0xf]
  %v154 = vld [vmem:[%s1 + $0x1b8] sm:$0xf]
  %v155 = vld [vmem:[%s1 + $0x1bc] sm:$0xf]
  %v156 = vld [vmem:[%s1 + $0x1c0] sm:$0xf]
  %v157 = vld [vmem:[%s1 + $0x1c4] sm:$0xf]
  %v158 = vld [vmem:[%s1 + $0x1c8] sm:$0xf]
  %v159 = vld [vmem:[%s1 + $0x1cc] sm:$0xf]
  %v160 = vld [vmem:[%s1 + $0x1d0] sm:$0xf]
  %v161 = vld [vmem:[%s1 + $0x1d4] sm:$0xf]
  %v162 = vld [vmem:[%s1 + $0x1d8] sm:$0xf]
  %v163 = vld [vmem:[%s1 + $0x1dc] sm:$0xf]
  %v164 = vld [vmem:[%s1 + $0x1e0] sm:$0xf]
  %v165 = vld [vmem:[%s1 + $0x1e4] sm:$0xf]
  %v166 = vld [vmem:[%s1 + $0x1e8] sm:$0xf]
  %v167 = vld [vmem:[%s1 + $0x1ec] sm:$0xf]
  %v168 = vld [vmem:[%s1 + $0x1f0] sm:$0xf]
  %v169 = vld [vmem:[%s1 + $0x1f4] sm:$0xf]
  %v170 = vld [vmem:[%s1 + $0x1f8] sm:$0xf]
  %v171 = vld [vmem:[%s1 + $0x1fc] sm:$0xf]
  %v172 = vld [vmem:[%s2] sm:$0x1]
  %v174 = vperm.slane %v172, 0
  %v304 = vunpack.c.l.b16 %v44
  %v305 = vunpack.c.l.b16 %v45
  %v306 = vunpack.c.l.b16 %v46
  %v307 = vunpack.c.l.b16 %v47
  %v308 = vunpack.c.l.b16 %v48
  %v309 = vunpack.c.l.b16 %v49
  %v310 = vunpack.c.l.b16 %v50
  %v311 = vunpack.c.l.b16 %v51
  %v312 = vunpack.c.l.b16 %v52
  %v313 = vunpack.c.l.b16 %v53
  %v314 = vunpack.c.l.b16 %v54
  %v315 = vunpack.c.l.b16 %v55
  %v316 = vunpack.c.l.b16 %v56
  %v317 = vunpack.c.l.b16 %v57
  %v318 = vunpack.c.l.b16 %v58
  %v319 = vunpack.c.l.b16 %v59
  %v320 = vunpack.c.l.b16 %v60
  %v321 = vunpack.c.l.b16 %v61
  %v322 = vunpack.c.l.b16 %v62
  %v323 = vunpack.c.l.b16 %v63
  %v324 = vunpack.c.l.b16 %v64
  %v325 = vunpack.c.l.b16 %v65
  %v326 = vunpack.c.l.b16 %v66
  %v327 = vunpack.c.l.b16 %v67
  %v328 = vunpack.c.l.b16 %v68
  %v329 = vunpack.c.l.b16 %v69
  %v330 = vunpack.c.l.b16 %v70
  %v331 = vunpack.c.l.b16 %v71
  %v332 = vunpack.c.l.b16 %v72
  %v333 = vunpack.c.l.b16 %v73
  %v334 = vunpack.c.l.b16 %v74
  %v335 = vunpack.c.l.b16 %v75
  %v336 = vunpack.c.l.b16 %v76
  %v337 = vunpack.c.l.b16 %v77
  %v338 = vunpack.c.l.b16 %v78
  %v339 = vunpack.c.l.b16 %v79
  %v340 = vunpack.c.l.b16 %v80
  %v341 = vunpack.c.l.b16 %v81
  %v342 = vunpack.c.l.b16 %v82
  %v343 = vunpack.c.l.b16 %v83
  %v344 = vunpack.c.l.b16 %v84
  %v345 = vunpack.c.l.b16 %v85
  %v346 = vunpack.c.l.b16 %v86
  %v347 = vunpack.c.l.b16 %v87
  %v348 = vunpack.c.l.b16 %v88
  %v349 = vunpack.c.l.b16 %v89
  %v350 = vunpack.c.l.b16 %v90
  %v351 = vunpack.c.l.b16 %v91
  %v352 = vunpack.c.l.b16 %v92
  %v353 = vunpack.c.l.b16 %v93
  %v354 = vunpack.c.l.b16 %v94
  %v355 = vunpack.c.l.b16 %v95
  %v356 = vunpack.c.l.b16 %v96
  %v357 = vunpack.c.l.b16 %v97
  %v358 = vunpack.c.l.b16 %v98
  %v359 = vunpack.c.l.b16 %v99
  %v360 = vunpack.c.l.b16 %v100
  %v361 = vunpack.c.l.b16 %v101
  %v362 = vunpack.c.l.b16 %v102
  %v363 = vunpack.c.l.b16 %v103
  %v364 = vunpack.c.l.b16 %v104
  %v365 = vunpack.c.l.b16 %v105
  %v366 = vunpack.c.l.b16 %v106
  %v367 = vunpack.c.l.b16 %v107
  %v368 = vunpack.c.l.b16 %v108
  %v369 = vunpack.c.l.b16 %v109
  %v370 = vunpack.c.l.b16 %v110
  %v371 = vunpack.c.l.b16 %v111
  %v372 = vunpack.c.l.b16 %v112
  %v373 = vunpack.c.l.b16 %v113
  %v374 = vunpack.c.l.b16 %v114
  %v375 = vunpack.c.l.b16 %v115
  %v376 = vunpack.c.l.b16 %v116
  %v377 = vunpack.c.l.b16 %v117
  %v378 = vunpack.c.l.b16 %v118
  %v379 = vunpack.c.l.b16 %v119
  %v380 = vunpack.c.l.b16 %v120
  %v381 = vunpack.c.l.b16 %v121
  %v382 = vunpack.c.l.b16 %v122
  %v383 = vunpack.c.l.b16 %v123
  %v384 = vunpack.c.l.b16 %v124
  %v385 = vunpack.c.l.b16 %v125
  %v386 = vunpack.c.l.b16 %v126
  %v387 = vunpack.c.l.b16 %v127
  %v388 = vunpack.c.l.b16 %v128
  %v389 = vunpack.c.l.b16 %v129
  %v390 = vunpack.c.l.b16 %v130
  %v391 = vunpack.c.l.b16 %v131
  %v392 = vunpack.c.l.b16 %v132
  %v393 = vunpack.c.l.b16 %v133
  %v394 = vunpack.c.l.b16 %v134
  %v395 = vunpack.c.l.b16 %v135
  %v396 = vunpack.c.l.b16 %v136
  %v397 = vunpack.c.l.b16 %v137
  %v398 = vunpack.c.l.b16 %v138
  %v399 = vunpack.c.l.b16 %v139
  %v400 = vunpack.c.l.b16 %v140
  %v401 = vunpack.c.l.b16 %v141
  %v402 = vunpack.c.l.b16 %v142
  %v403 = vunpack.c.l.b16 %v143
  %v404 = vunpack.c.l.b16 %v144
  %v405 = vunpack.c.l.b16 %v145
  %v406 = vunpack.c.l.b16 %v146
  %v407 = vunpack.c.l.b16 %v147
  %v408 = vunpack.c.l.b16 %v148
  %v409 = vunpack.c.l.b16 %v149
  %v410 = vunpack.c.l.b16 %v150
  %v411 = vunpack.c.l.b16 %v151
  %v412 = vunpack.c.l.b16 %v152
  %v413 = vunpack.c.l.b16 %v153
  %v414 = vunpack.c.l.b16 %v154
  %v415 = vunpack.c.l.b16 %v155
  %v416 = vunpack.c.l.b16 %v156
  %v417 = vunpack.c.l.b16 %v157
  %v418 = vunpack.c.l.b16 %v158
  %v419 = vunpack.c.l.b16 %v159
  %v420 = vunpack.c.l.b16 %v160
  %v421 = vunpack.c.l.b16 %v161
  %v422 = vunpack.c.l.b16 %v162
  %v423 = vunpack.c.l.b16 %v163
  %v424 = vunpack.c.l.b16 %v164
  %v425 = vunpack.c.l.b16 %v165
  %v426 = vunpack.c.l.b16 %v166
  %v427 = vunpack.c.l.b16 %v167
  %v428 = vunpack.c.l.b16 %v168
  %v429 = vunpack.c.l.b16 %v169
  %v430 = vunpack.c.l.b16 %v170
  %v431 = vunpack.c.l.b16 %v171
  %v432 = vpack.c.b16 %v305, %v304
  %v433 = vpack.c.b16 %v307, %v306
  %v434 = vpack.c.b16 %v309, %v308
  %v435 = vpack.c.b16 %v311, %v310
  %v436 = vpack.c.b16 %v313, %v312
  %v437 = vpack.c.b16 %v315, %v314
  %v438 = vpack.c.b16 %v317, %v316
  %v439 = vpack.c.b16 %v319, %v318
  %v440 = vpack.c.b16 %v321, %v320
  %v441 = vpack.c.b16 %v323, %v322
  %v442 = vpack.c.b16 %v325, %v324
  %v443 = vpack.c.b16 %v327, %v326
  %v444 = vpack.c.b16 %v329, %v328
  %v445 = vpack.c.b16 %v331, %v330
  %v446 = vpack.c.b16 %v333, %v332
  %v447 = vpack.c.b16 %v335, %v334
  %v448 = vpack.c.b16 %v337, %v336
  %v449 = vpack.c.b16 %v339, %v338
  %v450 = vpack.c.b16 %v341, %v340
  %v451 = vpack.c.b16 %v343, %v342
  %v452 = vpack.c.b16 %v345, %v344
  %v453 = vpack.c.b16 %v347, %v346
  %v454 = vpack.c.b16 %v349, %v348
  %v455 = vpack.c.b16 %v351, %v350
  %v456 = vpack.c.b16 %v353, %v352
  %v457 = vpack.c.b16 %v355, %v354
  %v458 = vpack.c.b16 %v357, %v356
  %v459 = vpack.c.b16 %v359, %v358
  %v460 = vpack.c.b16 %v361, %v360
  %v461 = vpack.c.b16 %v363, %v362
  %v462 = vpack.c.b16 %v365, %v364
  %v463 = vpack.c.b16 %v367, %v366
  %v464 = vpack.c.b16 %v369, %v368
  %v465 = vpack.c.b16 %v371, %v370
  %v466 = vpack.c.b16 %v373, %v372
  %v467 = vpack.c.b16 %v375, %v374
  %v468 = vpack.c.b16 %v377, %v376
  %v469 = vpack.c.b16 %v379, %v378
  %v470 = vpack.c.b16 %v381, %v380
  %v471 = vpack.c.b16 %v383, %v382
  %v472 = vpack.c.b16 %v385, %v384
  %v473 = vpack.c.b16 %v387, %v386
  %v474 = vpack.c.b16 %v389, %v388
  %v475 = vpack.c.b16 %v391, %v390
  %v476 = vpack.c.b16 %v393, %v392
  %v477 = vpack.c.b16 %v395, %v394
  %v478 = vpack.c.b16 %v397, %v396
  %v479 = vpack.c.b16 %v399, %v398
  %v480 = vpack.c.b16 %v401, %v400
  %v481 = vpack.c.b16 %v403, %v402
  %v482 = vpack.c.b16 %v405, %v404
  %v483 = vpack.c.b16 %v407, %v406
  %v484 = vpack.c.b16 %v409, %v408
  %v485 = vpack.c.b16 %v411, %v410
  %v486 = vpack.c.b16 %v413, %v412
  %v487 = vpack.c.b16 %v415, %v414
  %v488 = vpack.c.b16 %v417, %v416
  %v489 = vpack.c.b16 %v419, %v418
  %v490 = vpack.c.b16 %v421, %v420
  %v491 = vpack.c.b16 %v423, %v422
  %v492 = vpack.c.b16 %v425, %v424
  %v493 = vpack.c.b16 %v427, %v426
  %v494 = vpack.c.b16 %v429, %v428
  %v495 = vpack.c.b16 %v431, %v430
  %560 = vmatpush.bf16.msra.mxu0 %v439
  %561 = vmatpush.bf16.msra.mxu0 %v438
  %562 = vmatpush.bf16.msra.mxu0 %v437
  %563 = vmatpush.bf16.msra.mxu0 %v436
  %564 = vmatpush.bf16.msra.mxu0 %v435
  %565 = vmatpush.bf16.msra.mxu0 %v434
  %566 = vmatpush.bf16.msra.mxu0 %v433
  %567 = vmatpush.bf16.msra.mxu0 %v432
  %568 = vmatmul.bf16.gmra.mxu0 %v36
  %v569 = vpop.f32.mrf.mxu0
  %v570 = vadd.f32 %v174, %v569
  %v571 = vpop.f32.mrf.mxu0
  %572 = vdwg.mxu0
  %573 = vmatpush.bf16.msra.mxu0 %v447
  %574 = vmatpush.bf16.msra.mxu0 %v446
  %575 = vmatpush.bf16.msra.mxu0 %v445
  %576 = vmatpush.bf16.msra.mxu0 %v444
  %577 = vmatpush.bf16.msra.mxu0 %v443
  %578 = vmatpush.bf16.msra.mxu0 %v442
  %579 = vmatpush.bf16.msra.mxu0 %v441
  %580 = vmatpush.bf16.msra.mxu0 %v440
  %581 = vmatmul.bf16.gmra.mxu0 %v37
  %v582 = vpop.f32.mrf.mxu0
  %v583 = vadd.f32 %v570, %v582
  %v584 = vpop.f32.mrf.mxu0
  %585 = vdwg.mxu0
  %586 = vmatpush.bf16.msra.mxu0 %v455
  %587 = vmatpush.bf16.msra.mxu0 %v454
  %588 = vmatpush.bf16.msra.mxu0 %v453
  %589 = vmatpush.bf16.msra.mxu0 %v452
  %590 = vmatpush.bf16.msra.mxu0 %v451
  %591 = vmatpush.bf16.msra.mxu0 %v450
  %592 = vmatpush.bf16.msra.mxu0 %v449
  %593 = vmatpush.bf16.msra.mxu0 %v448
  %594 = vmatmul.bf16.gmra.mxu0 %v38
  %v595 = vpop.f32.mrf.mxu0
  %v596 = vadd.f32 %v583, %v595
  %v597 = vpop.f32.mrf.mxu0
  %598 = vdwg.mxu0
  %599 = vmatpush.bf16.msra.mxu0 %v463
  %600 = vmatpush.bf16.msra.mxu0 %v462
  %601 = vmatpush.bf16.msra.mxu0 %v461
  %602 = vmatpush.bf16.msra.mxu0 %v460
  %603 = vmatpush.bf16.msra.mxu0 %v459
  %604 = vmatpush.bf16.msra.mxu0 %v458
  %605 = vmatpush.bf16.msra.mxu0 %v457
  %606 = vmatpush.bf16.msra.mxu0 %v456
  %607 = vmatmul.bf16.gmra.mxu0 %v39
  %v608 = vpop.f32.mrf.mxu0
  %v609 = vadd.f32 %v596, %v608
  %v610 = vpop.f32.mrf.mxu0
  %611 = vdwg.mxu0
  %612 = vmatpush.bf16.msra.mxu0 %v471
  %613 = vmatpush.bf16.msra.mxu0 %v470
  %614 = vmatpush.bf16.msra.mxu0 %v469
  %615 = vmatpush.bf16.msra.mxu0 %v468
  %616 = vmatpush.bf16.msra.mxu0 %v467
  %617 = vmatpush.bf16.msra.mxu0 %v466
  %618 = vmatpush.bf16.msra.mxu0 %v465
  %619 = vmatpush.bf16.msra.mxu0 %v464
  %620 = vmatmul.bf16.gmra.mxu0 %v40
  %v621 = vpop.f32.mrf.mxu0
  %v622 = vadd.f32 %v609, %v621
  %v623 = vpop.f32.mrf.mxu0
  %624 = vdwg.mxu0
  %625 = vmatpush.bf16.msra.mxu0 %v479
  %626 = vmatpush.bf16.msra.mxu0 %v478
  %627 = vmatpush.bf16.msra.mxu0 %v477
  %628 = vmatpush.bf16.msra.mxu0 %v476
  %629 = vmatpush.bf16.msra.mxu0 %v475
  %630 = vmatpush.bf16.msra.mxu0 %v474
  %631 = vmatpush.bf16.msra.mxu0 %v473
  %632 = vmatpush.bf16.msra.mxu0 %v472
  %633 = vmatmul.bf16.gmra.mxu0 %v41
  %v634 = vpop.f32.mrf.mxu0
  %v635 = vadd.f32 %v622, %v634
  %v636 = vpop.f32.mrf.mxu0
  %637 = vdwg.mxu0
  %638 = vmatpush.bf16.msra.mxu0 %v487
  %639 = vmatpush.bf16.msra.mxu0 %v486
  %640 = vmatpush.bf16.msra.mxu0 %v485
  %641 = vmatpush.bf16.msra.mxu0 %v484
  %642 = vmatpush.bf16.msra.mxu0 %v483
  %643 = vmatpush.bf16.msra.mxu0 %v482
  %644 = vmatpush.bf16.msra.mxu0 %v481
  %645 = vmatpush.bf16.msra.mxu0 %v480
  %646 = vmatmul.bf16.gmra.mxu0 %v42
  %v647 = vpop.f32.mrf.mxu0
  %v648 = vadd.f32 %v635, %v647
  %v649 = vpop.f32.mrf.mxu0
  %650 = vdwg.mxu0
  %651 = vmatpush.bf16.msra.mxu0 %v495
  %652 = vmatpush.bf16.msra.mxu0 %v494
  %653 = vmatpush.bf16.msra.mxu0 %v493
  %654 = vmatpush.bf16.msra.mxu0 %v492
  %655 = vmatpush.bf16.msra.mxu0 %v491
  %656 = vmatpush.bf16.msra.mxu0 %v490
  %657 = vmatpush.bf16.msra.mxu0 %v489
  %658 = vmatpush.bf16.msra.mxu0 %v488
  %659 = vmatmul.bf16.gmra.mxu0 %v43
  %v660 = vpop.f32.mrf.mxu0
  %v661 = vadd.f32 %v648, %v660
  %v662 = vpop.f32.mrf.mxu0
  %663 = vdwg.mxu0
  %v664 = vmax.f32 %v661, 0.0
  %v665 = vpack.c.bf16 %v664, %v664
  %v666 = vld [vmem:[%s3] sm:$0xf]
  %v667 = vld [vmem:[%s3 + $0x4] sm:$0xf]
  %v668 = vld [vmem:[%s3 + $0x8] sm:$0xf]
  %v669 = vld [vmem:[%s3 + $0xc] sm:$0xf]
  %v670 = vld [vmem:[%s3 + $0x10] sm:$0xf]
  %v671 = vld [vmem:[%s3 + $0x14] sm:$0xf]
  %v672 = vld [vmem:[%s3 + $0x18] sm:$0xf]
  %v673 = vld [vmem:[%s3 + $0x1c] sm:$0xf]
  %v674 = vld [vmem:[%s4] sm:$0x1]
  %v676 = vperm.slane %v674, 0
  %v686 = vunpack.c.l.b16 %v666
  %v687 = vunpack.c.l.b16 %v667
  %v688 = vunpack.c.l.b16 %v668
  %v689 = vunpack.c.l.b16 %v669
  %v690 = vunpack.c.l.b16 %v670
  %v691 = vunpack.c.l.b16 %v671
  %v692 = vunpack.c.l.b16 %v672
  %v693 = vunpack.c.l.b16 %v673
  %v694 = vpack.c.b16 %v687, %v686
  %v695 = vpack.c.b16 %v689, %v688
  %v696 = vpack.c.b16 %v691, %v690
  %v697 = vpack.c.b16 %v693, %v692
  %vm702 = vcmask 523264
  %v704 = vsel %vm702, %v665, 0
  %706 = vmatpush.bf16.msra.mxu0 0
  %707 = vmatpush.bf16.msra.mxu0 0
  %708 = vmatpush.bf16.msra.mxu0 0
  %709 = vmatpush.bf16.msra.mxu0 0
  %710 = vmatpush.bf16.msra.mxu0 %v697
  %711 = vmatpush.bf16.msra.mxu0 %v696
  %712 = vmatpush.bf16.msra.mxu0 %v695
  %713 = vmatpush.bf16.msra.mxu0 %v694
  %714 = vmatmul.bf16.gmra.mxu0 %v704
  %v715 = vpop.f32.mrf.mxu0
  %v716 = vadd.f32 %v676, %v715
  %v717 = vpop.f32.mrf.mxu0
  %718 = vdwg.mxu0
  %v719 = vmax.f32 %v716, 0.0
  %v720 = vld [vmem:[%s5] sm:$0x1]
  %s721 = sld [smem:[#allocation2]]
  %v722 = vstv %s721
  %vm723 = vcmask 261120
  %v725 = vsel %vm723, %v720, 0
  %v728 = vsel %vm723, %v719, 0
  %730 = vmatpush.xpose.msra.mxu0 0.0
  %731 = vmatpush.xpose.msra.mxu0 0.0
  %732 = vmatpush.xpose.msra.mxu0 0.0
  %733 = vmatpush.xpose.msra.mxu0 0.0
  %734 = vmatpush.xpose.msra.mxu0 0.0
  %735 = vmatpush.xpose.msra.mxu0 0.0
  %736 = vmatpush.xpose.msra.mxu0 0.0
  %737 = vmatpush.xpose.msra.mxu0 0.0
  %738 = vmatpush.xpose.msra.mxu0 0.0
  %739 = vmatpush.xpose.msra.mxu0 0.0
  %740 = vmatpush.xpose.msra.mxu0 0.0
  %741 = vmatpush.xpose.msra.mxu0 0.0
  %742 = vmatpush.xpose.msra.mxu0 0.0
  %743 = vmatpush.xpose.msra.mxu0 0.0
  %744 = vmatpush.xpose.msra.mxu0 0.0
  %745 = vmatpush.xpose.msra.mxu0 %v728
  %746 = vmatmul.f32.gmra.mxu0 %v725
  %v747 = vpop.f32.mrf.mxu0
  %v748 = vadd.f32 %v722, %v747
  %749 = vdwg.mxu0
  %vm750 = vcmask 57344
  %751 = vst.msk [vmem:[%s7] sm:$0x1] %vm750, %v748
  // Predicated region
  $region30: #{dnn_forward.1} parent=0 // pred_check
    _
  $region31: #{dnn_forward.1} parent=0 // pred_check_branch
    %753 = sbr.rel (0) target = $region33
  $region32: #{dnn_forward.1} parent=0 // pred_region
    _
  $region33: #{dnn_forward.1} parent=0 // pred_fallthru
    _
  // Predicated region
  $region34: #{dnn_forward.1} parent=0 // pred_check
    _
  $region35: #{dnn_forward.1} parent=0 // pred_check_branch
    %755 = sbr.rel (0) target = $region37
  $region36: #{dnn_forward.1} parent=0 // pred_region
    _
  $region37: #{dnn_forward.1} parent=0 // pred_fallthru
    _

</llo_original>
